<compile_context>
chip_gen: v7x
topology: tpu7x:2x2x1
jax: 0.10.0
libtpu: 0.0.40
codegen_flags: <defaults>
</compile_context>

<pallas_src>
import jax
import jax.numpy as jnp
from jax.experimental import pallas as pl
from jax.experimental.pallas import tpu as pltpu

_SUBLANE = 8
_NEG_BIG = -1e30  # "minus infinity" for the padded (fake) class columns, kept in f32


def _round_up(n, m):
    return ((n + m - 1) // m) * m


# ---------------------------------------------------------------------------
# Kernels
# ---------------------------------------------------------------------------
def _softmax_kernel(x_ref, w_ref, b_ref, o_ref):
    # logits = x @ W + b on the MXU, f32 accumulation.  Padded class columns are
    # already masked to -1e30 via the bias, so no iota/where is needed here.
    logits = jnp.dot(x_ref[...], w_ref[...],
                     preferred_element_type=jnp.float32) + b_ref[...]
    m = jnp.max(logits, axis=-1, keepdims=True)
    e = jnp.exp(logits - m)          # padded cols: exp(-1e30 - m) == 0 exactly
    denom = jnp.sum(e, axis=-1, keepdims=True)
    o_ref[...] = (e / denom).astype(o_ref.dtype)   # exact divide (memory-bound kernel)


def _make_ce_kernel(n_rows, tile_rows):
    def kernel(x_ref, w_ref, b_ref, y_ref, partial_ref):
        pid = pl.program_id(0)

        logits = jnp.dot(x_ref[...], w_ref[...],
                         preferred_element_type=jnp.float32) + b_ref[...]
        tb, ncp = logits.shape

        # Numerically-stable logsumexp over the class axis (padded cols underflow).
        m = jnp.max(logits, axis=-1, keepdims=True)
        lse = m + jnp.log(jnp.sum(jnp.exp(logits - m), axis=-1, keepdims=True))

        # Pick logits[i, y_i] via one-hot select (y_ref is (TB, 1) int32, y < n_cls).
        cls_ids = jax.lax.broadcasted_iota(jnp.int32, (tb, ncp), 1)
        onehot = cls_ids == y_ref[...]
        picked = jnp.sum(jnp.where(onehot, logits, 0.0), axis=-1, keepdims=True)

        # Mask rows beyond the true batch (batch padding), sum this tile's contribution.
        row_ids = jax.lax.broadcasted_iota(jnp.int32, (tb, 1), 0) + pid * tile_rows
        contrib = jnp.where(row_ids < n_rows, lse - picked, 0.0)
        total = jnp.sum(contrib)

        # Per-tile partial sum (broadcast into a dense (8,128) slab so every grid
        # step is independent -> "parallel" semantics / megacore on v7x).
        partial_ref[...] = jnp.broadcast_to(total, partial_ref.shape)
    return kernel


# ---------------------------------------------------------------------------
# Wrapper (mirrors TorchModel.forward)
# ---------------------------------------------------------------------------
def torch_model_forward(x, w_t, b, y=None, *, tile_batch=2048, use_bf16=False):
    """w_t is (in_features, n_classes) (pre-transposed nn.Linear weight), b is (n_classes,).

    Returns softmax probabilities (batch, n_classes) when y is None, else the mean
    cross-entropy loss (scalar), matching the PyTorch module.
    """
    batch, in_features = x.shape
    n_cls = w_t.shape[1]

    # Pad the class axis only up to the sublane width (8): padded W columns are zero
    # and the class mask is hoisted into the bias as -1e30 (f32), so the kernels need
    # no per-element masking and the output HBM write stays narrow.
    ncp = _round_up(n_cls, _SUBLANE)
    compute_dtype = jnp.bfloat16 if use_bf16 else x.dtype
    w_pad = jnp.zeros((in_features, ncp), compute_dtype).at[:, :n_cls].set(
        w_t.astype(compute_dtype))
    b_pad = jnp.full((1, ncp), _NEG_BIG, jnp.float32).at[0, :n_cls].set(
        b.astype(jnp.float32))

    # Batch tiling: large multiple-of-8 tiles; pad the batch to a tile multiple.
    tb = min(_round_up(tile_batch, _SUBLANE), _round_up(batch, _SUBLANE))
    padded_batch = _round_up(batch, tb)
    num_tiles = padded_batch // tb
    grid = (num_tiles,)

    # Fused pad+cast of x (single XLA op); skipped entirely when not needed.
    # For production, feed x already in compute_dtype with batch % tb == 0 so this
    # extra HBM pass disappears.
    if padded_batch != batch or x.dtype != compute_dtype:
        x_p = jnp.zeros((padded_batch, in_features), compute_dtype).at[:batch].set(
            x.astype(compute_dtype))
    else:
        x_p = x

    if y is None:
        probs = pl.pallas_call(
            _softmax_kernel,
            out_shape=jax.ShapeDtypeStruct((padded_batch, ncp), jnp.float32),
            grid_spec=pltpu.PrefetchScalarGridSpec(
                num_scalar_prefetch=0,
                grid=grid,
                in_specs=[
                    pl.BlockSpec((tb, in_features), lambda i: (i, 0)),
                    pl.BlockSpec((in_features, ncp), lambda i: (0, 0)),
                    pl.BlockSpec((1, ncp), lambda i: (0, 0)),
                ],
                out_specs=pl.BlockSpec((tb, ncp), lambda i: (i, 0)),
            ),
            compiler_params=pltpu.CompilerParams(
                dimension_semantics=("parallel",)),
        )(x_p, w_pad, b_pad)
        return probs[:batch, :n_cls]

    y_p = y.astype(jnp.int32)
    if padded_batch != batch:
        y_p = jnp.zeros((padded_batch,), jnp.int32).at[:batch].set(y_p)
    y2 = y_p.reshape(padded_batch, 1)

    partials = pl.pallas_call(
        _make_ce_kernel(batch, tb),
        out_shape=jax.ShapeDtypeStruct((num_tiles, 8, 128), jnp.float32),
        grid_spec=pltpu.PrefetchScalarGridSpec(
            num_scalar_prefetch=0,
            grid=grid,
            in_specs=[
                pl.BlockSpec((tb, in_features), lambda i: (i, 0)),
                pl.BlockSpec((in_features, ncp), lambda i: (0, 0)),
                pl.BlockSpec((1, ncp), lambda i: (0, 0)),
                pl.BlockSpec((tb, 1), lambda i: (i, 0)),
            ],
            out_specs=pl.BlockSpec((1, 8, 128), lambda i: (i, 0, 0)),
        ),
        compiler_params=pltpu.CompilerParams(
            dimension_semantics=("parallel",)),  # independent per-tile partials
    )(x_p, w_pad, b_pad, y2)

    # Each tile's (8,128) slab holds one copy of its partial sum; finish in the wrapper.
    return jnp.sum(partials[:, 0, 0]) / jnp.float32(batch)


# ---------------------------------------------------------------------------
# Main
# ---------------------------------------------------------------------------
if __name__ == "__main__":
    input_size = 32
    n_classes = 5
    batch = 200          # deliberately not a multiple of the tile to exercise masking
    tile = 64            # small tile so the demo actually runs a multi-step grid

    key = jax.random.PRNGKey(0)
    kx, kw, kb, ky = jax.random.split(key, 4)

    # Deterministic parameter init (Kaiming-uniform-style bound, like nn.Linear).
    bound = 1.0 / jnp.sqrt(jnp.float32(input_size))
    w_t = jax.random.uniform(kw, (input_size, n_classes), jnp.float32, -bound, bound)
    b = jax.random.uniform(kb, (n_classes,), jnp.float32, -bound, bound)

    x = jax.random.normal(kx, (batch, input_size), jnp.float32)
    y = jax.random.randint(ky, (batch,), 0, n_classes, jnp.int32)

    # Inference path (y=None): softmax probabilities.
    probs = jax.block_until_ready(torch_model_forward(x, w_t, b, tile_batch=tile))

    # Training path (y given): mean cross-entropy loss.
    loss = jax.block_until_ready(torch_model_forward(x, w_t, b, y, tile_batch=tile))

    # Reference check against plain JAX.
    logits_ref = x @ w_t + b
    probs_ref = jax.nn.softmax(logits_ref, axis=-1)
    loss_ref = jnp.mean(
        jax.nn.logsumexp(logits_ref, axis=-1)
        - jnp.take_along_axis(logits_ref, y[:, None], axis=-1)[:, 0]
    )
    assert probs.shape == (batch, n_classes)
    assert jnp.allclose(probs, probs_ref, atol=1e-5), "softmax path mismatch"
    assert jnp.allclose(jnp.sum(probs, axis=-1), 1.0, atol=1e-5), "softmax rows not normalized"
    assert jnp.allclose(loss, loss_ref, atol=1e-4), "loss path mismatch"

    print("KERNEL_OK")
</pallas_src>

<mosaic_0001>
module attributes {stable_mosaic.version = 11 : i64} {
  func.func @_softmax_kernel(%arg0: i32, %arg1: memref<64x32xf32, #tpu.memory_space<vmem>>, %arg2: memref<32x8xf32, #tpu.memory_space<vmem>>, %arg3: memref<1x8xf32, #tpu.memory_space<vmem>>, %arg4: memref<64x8xf32, #tpu.memory_space<vmem>>) attributes {dimension_semantics = [#tpu.dimension_semantics<parallel>], iteration_bounds = array<i64: 4>, scalar_prefetch = 0 : i64, scratch_operands = 0 : i64, tpu.core_type = #tpu.core_type<tc>, window_params = [{transform_indices = @transform_0, window_bounds = array<i64: 64, 32>}, {pipeline_mode = #tpu.pipeline_mode<synchronous>, transform_indices = @transform_1, window_bounds = array<i64: 32, 8>}, {pipeline_mode = #tpu.pipeline_mode<synchronous>, transform_indices = @transform_2, window_bounds = array<i64: 1, 8>}, {transform_indices = @transform_3, window_bounds = array<i64: 64, 8>}]} {
    %c0 = arith.constant 0 : index
    %c0_0 = arith.constant 0 : index
    %0 = vector.load %arg1[%c0, %c0_0] : memref<64x32xf32, #tpu.memory_space<vmem>>, vector<64x32xf32>
    %c0_1 = arith.constant 0 : index
    %c0_2 = arith.constant 0 : index
    %1 = vector.load %arg2[%c0_1, %c0_2] : memref<32x8xf32, #tpu.memory_space<vmem>>, vector<32x8xf32>
    %cst = arith.constant dense<0.000000e+00> : vector<64x8xf32>
    %2 = tpu.matmul %0, %1, %cst {dimension_numbers = #tpu.dot_dimension_numbers<[1], [0], [0], [1], [0, 0, 1, 1], [], []>} : vector<64x32xf32>, vector<32x8xf32>, vector<64x8xf32> -> vector<64x8xf32>
    %c0_3 = arith.constant 0 : index
    %c0_4 = arith.constant 0 : index
    %3 = vector.load %arg3[%c0_3, %c0_4] : memref<1x8xf32, #tpu.memory_space<vmem>>, vector<1x8xf32>
    %4 = vector.broadcast %3 : vector<1x8xf32> to vector<64x8xf32>
    %5 = arith.addf %2, %4 : vector<64x8xf32>
    %cst_5 = arith.constant dense<0xFF800000> : vector<64xf32>
    %6 = vector.multi_reduction <maximumf>, %5, %cst_5 [1] : vector<64x8xf32> to vector<64xf32>
    %7 = vector.shape_cast %6 : vector<64xf32> to vector<64x1xf32>
    %8 = vector.broadcast %7 : vector<64x1xf32> to vector<64x8xf32>
    %9 = arith.subf %5, %8 : vector<64x8xf32>
    %10 = math.exp %9 : vector<64x8xf32>
    %cst_6 = arith.constant dense<0.000000e+00> : vector<64xf32>
    %11 = vector.multi_reduction <add>, %10, %cst_6 [1] : vector<64x8xf32> to vector<64xf32>
    %12 = vector.shape_cast %11 : vector<64xf32> to vector<64x1xf32>
    %13 = vector.broadcast %12 : vector<64x1xf32> to vector<64x8xf32>
    %14 = arith.divf %10, %13 : vector<64x8xf32>
    %c0_7 = arith.constant 0 : index
    %c0_8 = arith.constant 0 : index
    %15 = vector.load %arg4[%c0_7, %c0_8] : memref<64x8xf32, #tpu.memory_space<vmem>>, vector<64x8xf32>
    tpu.vector_store %arg4[%c0_7, %c0_8], %14 {strides = array<i32>} : memref<64x8xf32, #tpu.memory_space<vmem>>, vector<64x8xf32>,
    return
  }
  func.func @transform_0(%arg0: i32) -> (i32, i32) {
    %c0_i32 = arith.constant 0 : i32
    %c0_i32_0 = arith.constant 0 : i32
    return %arg0, %c0_i32 : i32, i32
  }
  func.func @transform_1(%arg0: i32) -> (i32, i32) {
    %c0_i32 = arith.constant 0 : i32
    %c0_i32_0 = arith.constant 0 : i32
    %c0_i32_1 = arith.constant 0 : i32
    return %c0_i32, %c0_i32_0 : i32, i32
  }
  func.func @transform_2(%arg0: i32) -> (i32, i32) {
    %c0_i32 = arith.constant 0 : i32
    %c0_i32_0 = arith.constant 0 : i32
    %c0_i32_1 = arith.constant 0 : i32
    return %c0_i32, %c0_i32_0 : i32, i32
  }
  func.func @transform_3(%arg0: i32) -> (i32, i32) {
    %c0_i32 = arith.constant 0 : i32
    %c0_i32_0 = arith.constant 0 : i32
    return %arg0, %c0_i32 : i32, i32
  }
}

</mosaic_0001>

<llo_original>
// kernel: tpu_custom_call.1
$region0: #{tpu_custom_call.1}
  #allocation0 [shape = 'u32[]', space=smem, size = 0x4, offset = 0x4, fixed_abs, tag = 'smem constant byte address 0x4 - core index']
  #allocation1 [shape = 'u32[144,128]{1,0:T(1,128)}', space=vmem, size = 0x12000, scoped, tag = 'internal scratch']
  %s0 = inlined_call_operand.vmem [shape: f32[256,32], index: 0, kind: input, shape index: {}]
  %s1 = inlined_call_operand.vmem [shape: f32[32,8], index: 1, kind: input, shape index: {}]
  %s2 = inlined_call_operand.vmem [shape: f32[1,8], index: 2, kind: input, shape index: {}]
  %s3 = inlined_call_operand.vmem [shape: f32[256,8], index: 3, kind: output, shape index: {}]
  %s4 = sld [smem:[#allocation0]]
  $region45: #{tpu_custom_call.1} parent=0
    _
  %s6 = ssub.s32 1, %s4
  %s7 = scalar_select 0, %s6, %s4
  loop: start=0, step=1, limit=6
  $region2: #{tpu_custom_call.1} parent=0 // loop_pre_header
    _
  $region3: #{tpu_custom_call.1} parent=0 // loop_header
    %s9 = sphi 0, %s13
    %p10 = scmp.ge.s32.totalorder %s9, 6
    %s19 = sphi 0, %s21
    %s22 = sphi 0, %s19
    %s23 = sphi 0, %s22
    %s39 = sphi 0, %s23
    %s43 = sphi 0, %s43
    %s45 = sphi 0, %s43
    %s46 = sphi 0, %s45
    %s60 = sphi 0, %s46
    %s64 = sphi 0, %s64
    %s66 = sphi 0, %s64
    %s67 = sphi 0, %s66
    %s81 = sphi 0, %s67
    %s87 = sphi 0, %s89
    %s90 = sphi 0, %s87
    %s91 = sphi 0, %s90
    %s107 = sphi 0, %s91
  $region4: #{tpu_custom_call.1} parent=0 // loop_header_branch
    %12 = sbr.rel (%p10) target = $region8
  $region5: #{tpu_custom_call.1} parent=0 // loop_body
    %s14 = ssub.s32 %s9, 1
    %s15 = ssub.s32 %s9, 2
    %s16 = sadd.s32 %s9, 1
    %s17 = ssub.s32 %s9, %s16
    %p18 = scmp.eq.s32.totalorder %s17, 0
    %s20 = sadd.s32 %s19, 1
    %s21 = scalar_select %p18, %s19, %s20
    %p24 = pneg %p18
    %p25 = scmp.eq.s32.totalorder %s9, 3
    %p26 = por %p24, %p25
    %p27 = scmp.ne.s32.totalorder %s19, %s22
    %p28 = scmp.eq.s32.totalorder %s9, 0
    %p29 = por %p27, %p28
    %p30 = scmp.ne.s32.totalorder %s19, %s22
    %p31 = scmp.eq.s32.totalorder %s14, 3
    %p32 = por %p30, %p31
    %p33 = scmp.ne.s32.totalorder %s22, %s23
    %p34 = scmp.eq.s32.totalorder %s14, 0
    %p35 = por %p33, %p34
    %p36 = scmp.ne.s32.totalorder %s22, %s23
    %p37 = scmp.eq.s32.totalorder %s15, 3
    %p38 = por %p36, %p37
    %p40 = scmp.ne.s32.totalorder %s23, %s39
    %p41 = scmp.eq.s32.totalorder %s15, 0
    %p42 = por %p40, %p41
    %s44 = sadd.s32 %s43, 1
    %p47 = scmp.eq.s32.totalorder %s9, 3
    %p48 = scmp.ne.s32.totalorder %s43, %s45
    %p49 = scmp.eq.s32.totalorder %s9, 0
    %p50 = por %p48, %p49
    %p51 = scmp.ne.s32.totalorder %s43, %s45
    %p52 = scmp.eq.s32.totalorder %s14, 3
    %p53 = por %p51, %p52
    %p54 = scmp.ne.s32.totalorder %s45, %s46
    %p55 = scmp.eq.s32.totalorder %s14, 0
    %p56 = por %p54, %p55
    %p57 = scmp.ne.s32.totalorder %s45, %s46
    %p58 = scmp.eq.s32.totalorder %s15, 3
    %p59 = por %p57, %p58
    %p61 = scmp.ne.s32.totalorder %s46, %s60
    %p62 = scmp.eq.s32.totalorder %s15, 0
    %p63 = por %p61, %p62
    %s65 = sadd.s32 %s64, 1
    %p68 = scmp.eq.s32.totalorder %s9, 3
    %p69 = scmp.ne.s32.totalorder %s64, %s66
    %p70 = scmp.eq.s32.totalorder %s9, 0
    %p71 = por %p69, %p70
    %p72 = scmp.ne.s32.totalorder %s64, %s66
    %p73 = scmp.eq.s32.totalorder %s14, 3
    %p74 = por %p72, %p73
    %p75 = scmp.ne.s32.totalorder %s66, %s67
    %p76 = scmp.eq.s32.totalorder %s14, 0
    %p77 = por %p75, %p76
    %p78 = scmp.ne.s32.totalorder %s66, %s67
    %p79 = scmp.eq.s32.totalorder %s15, 3
    %p80 = por %p78, %p79
    %p82 = scmp.ne.s32.totalorder %s67, %s81
    %p83 = scmp.eq.s32.totalorder %s15, 0
    %p84 = por %p82, %p83
    %s85 = ssub.s32 %s9, %s16
    %p86 = scmp.eq.s32.totalorder %s85, 0
    %s88 = sadd.s32 %s87, 1
    %s89 = scalar_select %p86, %s87, %s88
    %p92 = pneg %p86
    %p93 = scmp.eq.s32.totalorder %s9, 3
    %p94 = por %p92, %p93
    %p95 = scmp.ne.s32.totalorder %s87, %s90
    %p96 = scmp.eq.s32.totalorder %s9, 0
    %p97 = por %p95, %p96
    %p98 = scmp.ne.s32.totalorder %s87, %s90
    %p99 = scmp.eq.s32.totalorder %s14, 3
    %p100 = por %p98, %p99
    %p101 = scmp.ne.s32.totalorder %s90, %s91
    %p102 = scmp.eq.s32.totalorder %s14, 0
    %p103 = por %p101, %p102
    %p104 = scmp.ne.s32.totalorder %s90, %s91
    %p105 = scmp.eq.s32.totalorder %s15, 3
    %p106 = por %p104, %p105
    %p108 = scmp.ne.s32.totalorder %s91, %s107
    %p109 = scmp.eq.s32.totalorder %s15, 0
    %p110 = por %p108, %p109
    %p111 = scmp.le.s32.totalorder 1, %s9
    %p112 = scmp.lt.s32.totalorder %s9, 5
    %p113 = pnand %p111, %p112
    %p114 = pneg %p113
    // Predicated region
    $region9: #{tpu_custom_call.1} parent=5 // pred_check
      _
    $region10: #{tpu_custom_call.1} parent=5 // pred_check_branch
      %116 = sbr.rel (%p113) target = $region12
    $region11: #{tpu_custom_call.1} parent=5 // pred_region
      %s117 = ssub.s32 %s9, 1
      // Predicated region
      $region13: #{tpu_custom_call.1} parent=11 // pred_check
        %p118 = pneg %p56
      $region14: #{tpu_custom_call.1} parent=11 // pred_check_branch
        %120 = sbr.rel (%p118) target = $region16
      $region15: #{tpu_custom_call.1} parent=11 // pred_region
        _
      $region16: #{tpu_custom_call.1} parent=11 // pred_fallthru
        _
      // Predicated region
      $region17: #{tpu_custom_call.1} parent=11 // pred_check
        %p121 = pneg %p77
      $region18: #{tpu_custom_call.1} parent=11 // pred_check_branch
        %123 = sbr.rel (%p121) target = $region20
      $region19: #{tpu_custom_call.1} parent=11 // pred_region
        _
      $region20: #{tpu_custom_call.1} parent=11 // pred_fallthru
        _
    $region12: #{tpu_custom_call.1} parent=5 // pred_fallthru
      _
    %p124 = scmp.lt.s32.totalorder %s9, 4
    // Predicated region
    $region21: #{tpu_custom_call.1} parent=5 // pred_check
      %p125 = pneg %p124
    $region22: #{tpu_custom_call.1} parent=5 // pred_check_branch
      %127 = sbr.rel (%p125) target = $region24
    $region23: #{tpu_custom_call.1} parent=5 // pred_region
      // Predicated region
      $region25: #{tpu_custom_call.1} parent=23 // pred_check
        %p128 = pneg %p29
      $region26: #{tpu_custom_call.1} parent=23 // pred_check_branch
        %130 = sbr.rel (%p128) target = $region28
      $region27: #{tpu_custom_call.1} parent=23 // pred_region
        %s131 = smul.u32 8, %s9
        %p132 = scmp.lt.s32.totalorder %s131, 31
        %s133 = scalar_select %p132, %s131, 31
        %s134 = smul.addr %s133, 8
        %s135 = scalar_lea.vmem %s0, %s134
        %s136 = smul.u32 8, %s9
      $region28: #{tpu_custom_call.1} parent=23 // pred_fallthru
        _
    $region24: #{tpu_custom_call.1} parent=5 // pred_fallthru
      _
    %p137 = scmp.le.s32.totalorder 1, %s9
    %p138 = scmp.lt.s32.totalorder %s9, 5
    %p139 = pnand %p137, %p138
    %p140 = pneg %p139
    // Predicated region
    $region29: #{tpu_custom_call.1} parent=5 // pred_check
      _
    $region30: #{tpu_custom_call.1} parent=5 // pred_check_branch
      %142 = sbr.rel (%p139) target = $region32
    $region31: #{tpu_custom_call.1} parent=5 // pred_region
      %s143 = ssub.s32 %s9, 1
      %s144 = smul.u32 8, %s14
      %p145 = scmp.lt.s32.totalorder %s144, 31
      %s146 = scalar_select %p145, %s144, 31
      %s147 = smul.addr %s146, 8
      %s148 = scalar_lea.vmem %s0, %s147
      %p149 = pneg %p35
      %p150 = pneg %p32
      %p151 = pneg %p56
      %p152 = pneg %p53
      %p153 = pneg %p77
      %p154 = pneg %p74
      %p155 = pneg %p103
      %p156 = pneg %p100
      %s157 = smul.u32 8, %s14
      %p158 = scmp.lt.s32.totalorder %s157, 31
      %s159 = scalar_select %p158, %s157, 31
      %s160 = smul.addr %s159, 8
      %s161 = scalar_lea.vmem %s3, %s160
      %s162 = smul.u32 8, %s14
      %p163 = scmp.lt.s32.totalorder %s162, 31
      %s164 = scalar_select %p163, %s162, 31
      %s165 = smul.addr %s164, 8
      %s166 = scalar_lea.vmem %s0, %s165
      %s167 = smul.u32 8, %s14
      %s168 = smul.u32 8, %s14
      %p169 = scmp.lt.s32.totalorder %s168, 31
      %s170 = scalar_select %p169, %s168, 31
      %s171 = smul.addr %s170, 8
      %s172 = scalar_lea.vmem %s3, %s171
      %s173 = smul.u32 8, %s14
      %v174 = vld [vmem:[%s166] sm:$0xff]
      %v175 = vld [vmem:[%s166 + $0x8] sm:$0xff]
      %v176 = vld [vmem:[%s166 + $0x10] sm:$0xff]
      %v177 = vld [vmem:[%s166 + $0x18] sm:$0xff]
      %v178 = vld [vmem:[%s166 + $0x20] sm:$0xff]
      %v179 = vld [vmem:[%s166 + $0x28] sm:$0xff]
      %v180 = vld [vmem:[%s166 + $0x30] sm:$0xff]
      %v181 = vld [vmem:[%s166 + $0x38] sm:$0xff]
      %v182 = vld [vmem:[%s1] sm:$0xff]
      %v183 = vld [vmem:[%s1 + $0x8] sm:$0xff]
      %v184 = vld [vmem:[%s1 + $0x10] sm:$0xff]
      %v185 = vld [vmem:[%s1 + $0x18] sm:$0xff]
      %v186 = vld [vmem:[%s2] sm:$0x1]
      %v188 = vlaneseq
      %v189 = vshrl.u32 %v188, 7
      %v190 = vsub.s32 0, %v189
      %v191 = vrot.slane %v186, %v190
      %vm193 = vcmask 261120
      %v195 = vsel %vm193, %v174, 0
      %v198 = vsel %vm193, %v175, 0
      %v201 = vsel %vm193, %v176, 0
      %v204 = vsel %vm193, %v177, 0
      %v207 = vsel %vm193, %v178, 0
      %v210 = vsel %vm193, %v179, 0
      %v213 = vsel %vm193, %v180, 0
      %v216 = vsel %vm193, %v181, 0
      %218 = vmatprep.subr.mxu0 0.0
      %219 = vmatpush1.msra.mxu0 %v182
      %220 = vmatprep.subr.mxu0 0.0
      %221 = vmatpush1.msra.mxu0 %v183
      %222 = vmatprep.subr.mxu0 0.0
      %223 = vmatpush1.msra.mxu0 %v184
      %224 = vmatprep.subr.mxu0 0.0
      %225 = vmatpush1.msra.mxu0 %v185
      %226 = vmatprep.subr.mxu0 0.0
      %227 = vmatpush1.msra.mxu0 0.0
      %228 = vmatprep.subr.mxu0 0.0
      %229 = vmatpush1.msra.mxu0 0.0
      %230 = vmatprep.subr.mxu0 0.0
      %231 = vmatpush1.msra.mxu0 0.0
      %232 = vmatprep.subr.mxu0 0.0
      %233 = vmatpush1.msra.mxu0 0.0
      %234 = vmatprep.subr.mxu0 0.0
      %235 = vmatpush1.msra.mxu0 0.0
      %236 = vmatprep.subr.mxu0 0.0
      %237 = vmatpush1.msra.mxu0 0.0
      %238 = vmatprep.subr.mxu0 0.0
      %239 = vmatpush1.msra.mxu0 0.0
      %240 = vmatprep.subr.mxu0 0.0
      %241 = vmatpush1.msra.mxu0 0.0
      %242 = vmatprep.subr.mxu0 0.0
      %243 = vmatpush1.msra.mxu0 0.0
      %244 = vmatprep.subr.mxu0 0.0
      %245 = vmatpush1.msra.mxu0 0.0
      %246 = vmatprep.subr.mxu0 0.0
      %247 = vmatpush1.msra.mxu0 0.0
      %248 = vmatprep.subr.mxu0 0.0
      %249 = vmatpush1.msra.mxu0 0.0
      %250 = vmatprep.subr.mxu0 0.0
      %251 = vmatpush1.msra.mxu0 0.0
      %252 = vmatprep.subr.mxu0 0.0
      %253 = vmatpush1.msra.mxu0 0.0
      %254 = vmatprep.subr.mxu0 0.0
      %255 = vmatpush1.msra.mxu0 0.0
      %256 = vmatprep.subr.mxu0 0.0
      %257 = vmatpush1.msra.mxu0 0.0
      %258 = vmatprep.subr.mxu0 0.0
      %259 = vmatpush1.msra.mxu0 0.0
      %260 = vmatprep.subr.mxu0 0.0
      %261 = vmatpush1.msra.mxu0 0.0
      %262 = vmatprep.subr.mxu0 0.0
      %263 = vmatpush1.msra.mxu0 0.0
      %264 = vmatprep.subr.mxu0 0.0
      %265 = vmatpush1.msra.mxu0 0.0
      %266 = vmatprep.subr.mxu0 0.0
      %267 = vmatpush1.msra.mxu0 0.0
      %268 = vmatprep.subr.mxu0 0.0
      %269 = vmatpush1.msra.mxu0 0.0
      %270 = vmatprep.subr.mxu0 0.0
      %271 = vmatpush1.msra.mxu0 0.0
      %272 = vmatprep.subr.mxu0 0.0
      %273 = vmatpush1.msra.mxu0 0.0
      %274 = vmatprep.subr.mxu0 0.0
      %275 = vmatpush1.msra.mxu0 0.0
      %276 = vmatprep.subr.mxu0 0.0
      %277 = vmatpush1.msra.mxu0 0.0
      %278 = vmatprep.subr.mxu0 0.0
      %279 = vmatpush1.msra.mxu0 0.0
      %280 = vmatprep.subr.mxu0 0.0
      %281 = vmatpush1.msra.mxu0 0.0
      %282 = vmatprep.mubr.f32.mxu0 0.0
      %283 = vmatmul.mubr.f32.gmra.mrb[0].mxu0 %v195
      %v284 = vpop.f32.mrb[0].mxu0
      %v285 = vadd.f32 %v191, %v284
      %v286 = vpop.f32.mrb[0].mxu0
      %287 = vmatprep.mubr.f32.mxu0 0.0
      %288 = vmatmul.mubr.f32.gmra.mrb[0].mxu0 %v198
      %v289 = vpop.f32.mrb[0].mxu0
      %v290 = vadd.f32 %v191, %v289
      %v291 = vpop.f32.mrb[0].mxu0
      %292 = vmatprep.mubr.f32.mxu0 0.0
      %293 = vmatmul.mubr.f32.gmra.mrb[0].mxu0 %v201
      %v294 = vpop.f32.mrb[0].mxu0
      %v295 = vadd.f32 %v191, %v294
      %v296 = vpop.f32.mrb[0].mxu0
      %297 = vmatprep.mubr.f32.mxu0 0.0
      %298 = vmatmul.mubr.f32.gmra.mrb[0].mxu0 %v204
      %v299 = vpop.f32.mrb[0].mxu0
      %v300 = vadd.f32 %v191, %v299
      %v301 = vpop.f32.mrb[0].mxu0
      %302 = vmatprep.mubr.f32.mxu0 0.0
      %303 = vmatmul.mubr.f32.gmra.mrb[0].mxu0 %v207
      %v304 = vpop.f32.mrb[0].mxu0
      %v305 = vadd.f32 %v191, %v304
      %v306 = vpop.f32.mrb[0].mxu0
      %307 = vmatprep.mubr.f32.mxu0 0.0
      %308 = vmatmul.mubr.f32.gmra.mrb[0].mxu0 %v210
      %v309 = vpop.f32.mrb[0].mxu0
      %v310 = vadd.f32 %v191, %v309
      %v311 = vpop.f32.mrb[0].mxu0
      %312 = vmatprep.mubr.f32.mxu0 0.0
      %313 = vmatmul.mubr.f32.gmra.mrb[0].mxu0 %v213
      %v314 = vpop.f32.mrb[0].mxu0
      %v315 = vadd.f32 %v191, %v314
      %v316 = vpop.f32.mrb[0].mxu0
      %317 = vmatprep.mubr.f32.mxu0 0.0
      %318 = vmatmul.mubr.f32.gmra.mrb[0].mxu0 %v216
      %v319 = vpop.f32.mrb[0].mxu0
      %v320 = vadd.f32 %v191, %v319
      %v321 = vpop.f32.mrb[0].mxu0
      %322 = vdwg.mxu0
      %vm323 = vcmask 64512
      %v324 = vsel %vm323, %v285, -inf
      %325 = vmax.xlane.f32.xlu0 %v324
      %v326 = vpop.xlane.xlu0 %325
      %v327 = vsel %vm323, %v290, -inf
      %328 = vmax.xlane.f32.xlu0 %v327
      %v329 = vpop.xlane.xlu0 %328
      %v330 = vsel %vm323, %v295, -inf
      %331 = vmax.xlane.f32.xlu0 %v330
      %v332 = vpop.xlane.xlu0 %331
      %v333 = vsel %vm323, %v300, -inf
      %334 = vmax.xlane.f32.xlu0 %v333
      %v335 = vpop.xlane.xlu0 %334
      %v336 = vsel %vm323, %v305, -inf
      %337 = vmax.xlane.f32.xlu0 %v336
      %v338 = vpop.xlane.xlu0 %337
      %v339 = vsel %vm323, %v310, -inf
      %340 = vmax.xlane.f32.xlu0 %v339
      %v341 = vpop.xlane.xlu0 %340
      %v342 = vsel %vm323, %v315, -inf
      %343 = vmax.xlane.f32.xlu0 %v342
      %v344 = vpop.xlane.xlu0 %343
      %v345 = vsel %vm323, %v320, -inf
      %346 = vmax.xlane.f32.xlu0 %v345
      %v347 = vpop.xlane.xlu0 %346
      %v348 = vsub.f32 %v285, %v326
      %v349 = vsub.f32 %v290, %v329
      %v350 = vsub.f32 %v295, %v332
      %v351 = vsub.f32 %v300, %v335
      %v352 = vsub.f32 %v305, %v338
      %v353 = vsub.f32 %v310, %v341
      %v354 = vsub.f32 %v315, %v344
      %v355 = vsub.f32 %v320, %v347
      %v356 = vmul.f32 %v348, 1.442695
      %v357 = vpow.pop %v356
      %v358 = vmul.f32 %v349, 1.442695
      %v359 = vpow.pop %v358
      %v360 = vmul.f32 %v350, 1.442695
      %v361 = vpow.pop %v360
      %v362 = vmul.f32 %v351, 1.442695
      %v363 = vpow.pop %v362
      %v364 = vmul.f32 %v352, 1.442695
      %v365 = vpow.pop %v364
      %v366 = vmul.f32 %v353, 1.442695
      %v367 = vpow.pop %v366
      %v368 = vmul.f32 %v354, 1.442695
      %v369 = vpow.pop %v368
      %v370 = vmul.f32 %v355, 1.442695
      %v371 = vpow.pop %v370
      %v372 = vsel %vm323, %v357, 0.0
      %373 = vadd.xlane.f32.xlu0 %v372
      %v374 = vpop.xlane.xlu0 %373
      %v375 = vsel %vm323, %v359, 0.0
      %376 = vadd.xlane.f32.xlu0 %v375
      %v377 = vpop.xlane.xlu0 %376
      %v378 = vsel %vm323, %v361, 0.0
      %379 = vadd.xlane.f32.xlu0 %v378
      %v380 = vpop.xlane.xlu0 %379
      %v381 = vsel %vm323, %v363, 0.0
      %382 = vadd.xlane.f32.xlu0 %v381
      %v383 = vpop.xlane.xlu0 %382
      %v384 = vsel %vm323, %v365, 0.0
      %385 = vadd.xlane.f32.xlu0 %v384
      %v386 = vpop.xlane.xlu0 %385
      %v387 = vsel %vm323, %v367, 0.0
      %388 = vadd.xlane.f32.xlu0 %v387
      %v389 = vpop.xlane.xlu0 %388
      %v390 = vsel %vm323, %v369, 0.0
      %391 = vadd.xlane.f32.xlu0 %v390
      %v392 = vpop.xlane.xlu0 %391
      %v393 = vsel %vm323, %v371, 0.0
      %394 = vadd.xlane.f32.xlu0 %v393
      %v395 = vpop.xlane.xlu0 %394
      %v396 = vrcp.pop %v374
      %v397 = vmul.f32 %v357, %v396
      %v398 = vrcp.pop %v377
      %v399 = vmul.f32 %v359, %v398
      %v400 = vrcp.pop %v380
      %v401 = vmul.f32 %v361, %v400
      %v402 = vrcp.pop %v383
      %v403 = vmul.f32 %v363, %v402
      %v404 = vrcp.pop %v386
      %v405 = vmul.f32 %v365, %v404
      %v406 = vrcp.pop %v389
      %v407 = vmul.f32 %v367, %v406
      %v408 = vrcp.pop %v392
      %v409 = vmul.f32 %v369, %v408
      %v410 = vrcp.pop %v395
      %v411 = vmul.f32 %v371, %v410
      %412 = vst.msk [vmem:[%s172] sm:$0xff] %vm323, %v397
      %413 = vst.msk [vmem:[%s172 + $0x8] sm:$0xff] %vm323, %v399
      %414 = vst.msk [vmem:[%s172 + $0x10] sm:$0xff] %vm323, %v401
      %415 = vst.msk [vmem:[%s172 + $0x18] sm:$0xff] %vm323, %v403
      %416 = vst.msk [vmem:[%s172 + $0x20] sm:$0xff] %vm323, %v405
      %417 = vst.msk [vmem:[%s172 + $0x28] sm:$0xff] %vm323, %v407
      %418 = vst.msk [vmem:[%s172 + $0x30] sm:$0xff] %vm323, %v409
      %419 = vst.msk [vmem:[%s172 + $0x38] sm:$0xff] %vm323, %v411
      %s420 = smul.u32 8, %s14
      %p421 = scmp.lt.s32.totalorder %s420, 31
      %s422 = scalar_select %p421, %s420, 31
      %s423 = smul.addr %s422, 8
      %s424 = scalar_lea.vmem %s3, %s423
      // Predicated region
      $region33: #{tpu_custom_call.1} parent=31 // pred_check
        %p425 = pneg %p100
      $region34: #{tpu_custom_call.1} parent=31 // pred_check_branch
        %427 = sbr.rel (%p425) target = $region36
      $region35: #{tpu_custom_call.1} parent=31 // pred_region
        %s428 = smul.u32 8, %s14
      $region36: #{tpu_custom_call.1} parent=31 // pred_fallthru
        _
    $region32: #{tpu_custom_call.1} parent=5 // pred_fallthru
      _
    %p429 = scmp.le.s32.totalorder 2, %s9
    // Predicated region
    $region37: #{tpu_custom_call.1} parent=5 // pred_check
      %p430 = pneg %p429
    $region38: #{tpu_custom_call.1} parent=5 // pred_check_branch
      %432 = sbr.rel (%p430) target = $region40
    $region39: #{tpu_custom_call.1} parent=5 // pred_region
      %s433 = ssub.s32 %s9, 2
      // Predicated region
      $region41: #{tpu_custom_call.1} parent=39 // pred_check
        %p434 = pneg %p106
      $region42: #{tpu_custom_call.1} parent=39 // pred_check_branch
        %436 = sbr.rel (%p434) target = $region44
      $region43: #{tpu_custom_call.1} parent=39 // pred_region
        %s437 = smul.u32 8, %s15
        %p438 = scmp.lt.s32.totalorder %s437, 31
        %s439 = scalar_select %p438, %s437, 31
        %s440 = smul.addr %s439, 8
        %s441 = scalar_lea.vmem %s3, %s440
      $region44: #{tpu_custom_call.1} parent=39 // pred_fallthru
        _
    $region40: #{tpu_custom_call.1} parent=5 // pred_fallthru
      _
  $region6: #{tpu_custom_call.1} parent=0 // loop_footer
    %s13 = sadd.s32 1, %s9
  $region7: #{tpu_custom_call.1} parent=0 // loop_footer_branch
    %8 = sbr.rel target = $region3
  $region8: #{tpu_custom_call.1} parent=0 // loop_exit
    _

</llo_original>
